<compile_context>
chip_gen: v6e
topology: v6e:2x2x1
jax: 0.10.0
libtpu: 0.0.40
codegen_flags: <defaults>
</compile_context>

<pallas_src>
import functools

import jax
import jax.numpy as jnp
from jax.experimental import pallas as pl
from jax.experimental.pallas import tpu as pltpu

NUM_CLASSES = 16
GAMMA = 2.0          # matches FocalLoss(gamma=2.0)
ALPHA_SCALAR = 0.25  # matches FocalLoss(alpha=0.25) -> per-class vector

MAX_TILE_N = 1024    # lane-axis tile; tiny vs VMEM (16*1024*4B*2buf ~ 128 KiB)


def _round_up(x, m):
    return (x + m - 1) // m * m


def focal_loss_kernel(logits_ref, targets_ref, alpha_ref, out_ref, *, gamma):
    # logits_ref: (C, T)  targets_ref: (1, T) int32  alpha_ref: (C, 1)
    x = logits_ref[...].astype(jnp.float32)        # (C, T)
    t = targets_ref[...]                           # (1, T) int32
    a = alpha_ref[...].astype(jnp.float32)         # (C, 1)

    # --- numerically-stable log-softmax pieces, reducing over classes (axis 0) ---
    m = jnp.max(x, axis=0, keepdims=True)                              # (1, T)
    shifted = x - m                                                    # (C, T)
    lse = jnp.log(jnp.sum(jnp.exp(shifted), axis=0, keepdims=True))    # (1, T)

    # one-hot of targets via sublane iota (no gather); lanes = samples
    row = jax.lax.broadcasted_iota(jnp.int32, x.shape, 0)              # (C, T)
    onehot = (row == t).astype(jnp.float32)                            # (C, T)

    # ce = lse - shifted[target]  (logp never materialized)
    ce = lse - jnp.sum(onehot * shifted, axis=0, keepdims=True)        # (1, T)

    # --- focal weighting ---
    pt = jnp.exp(-ce)                                                  # (1, T)
    alpha_t = jnp.sum(onehot * a, axis=0, keepdims=True)               # (1, T)
    u = 1.0 - pt
    if float(gamma) == 2.0:
        w = u * u            # VPU multiply; avoids EUP pow + 0**gamma edge case
    else:
        w = u ** jnp.float32(gamma)

    # per-sample focal loss, lane-dense store (reduction done in wrapper)
    out_ref[...] = alpha_t * w * ce                                    # (1, T)


def focal_loss(logits, targets, alpha, gamma=GAMMA):
    """logits: (N, C), targets: (N,) int, alpha: (C,) f32 -> scalar f32 (mean)."""
    n, c = logits.shape
    tile_n = min(MAX_TILE_N, _round_up(n, 128))
    padded_n = _round_up(n, tile_n)
    grid_n = padded_n // tile_n

    # lane-dense layout: classes on sublanes, samples on lanes. Native dtype
    # is passed through (kernel upcasts), padding rows are sliced off below.
    x_t = jnp.pad(logits, ((0, padded_n - n), (0, 0))).T               # (C, Np)
    t2 = jnp.pad(targets.astype(jnp.int32), (0, padded_n - n)).reshape(1, padded_n)
    a2 = alpha.astype(jnp.float32).reshape(c, 1)                       # (C, 1)

    per_sample = pl.pallas_call(
        functools.partial(focal_loss_kernel, gamma=gamma),
        out_shape=jax.ShapeDtypeStruct((1, padded_n), jnp.float32),
        grid=(grid_n,),
        in_specs=[
            pl.BlockSpec((c, tile_n), lambda i: (0, i)),   # logits tile
            pl.BlockSpec((1, tile_n), lambda i: (0, i)),   # targets tile
            pl.BlockSpec((c, 1), lambda i: (0, 0)),        # alpha (resident)
        ],
        out_specs=pl.BlockSpec((1, tile_n), lambda i: (0, i)),
        compiler_params=pltpu.CompilerParams(
            dimension_semantics=("parallel",)),
    )(x_t, t2, a2)

    # reduction='mean' over the true (unpadded) N
    return jnp.sum(per_sample[0, :n]) / jnp.float32(n)


def focal_loss_ref(logits, targets, alpha, gamma=GAMMA):
    """Pure-JAX reference mirroring the PyTorch module (reduction='mean')."""
    logp = jax.nn.log_softmax(logits.astype(jnp.float32), axis=-1)
    ce = -jnp.take_along_axis(logp, targets[:, None].astype(jnp.int32), axis=-1)[:, 0]
    pt = jnp.exp(-ce)
    alpha_t = alpha[targets]
    return jnp.mean(alpha_t * (1.0 - pt) ** gamma * ce)


if __name__ == "__main__":
    key = jax.random.PRNGKey(0)
    k1, k2, k3, k4 = jax.random.split(key, 4)

    alpha = jnp.full((NUM_CLASSES,), ALPHA_SCALAR, dtype=jnp.float32)

    # small case (single tile, padded 32 -> 128 lanes)
    batch = 32
    logits = jax.random.normal(k1, (batch, NUM_CLASSES), dtype=jnp.float32)
    targets = jax.random.randint(k2, (batch,), 0, NUM_CLASSES, dtype=jnp.int32)
    out = jax.block_until_ready(focal_loss(logits, targets, alpha))
    ref = focal_loss_ref(logits, targets, alpha)
    assert jnp.allclose(out, ref, rtol=1e-4, atol=1e-6), (out, ref)

    # multi-tile case (exercises grid > 1, padding mask, parallel axis)
    batch2 = 2500  # -> padded 3072, grid of 3 tiles of 1024 lanes
    logits2 = jax.random.normal(k3, (batch2, NUM_CLASSES), dtype=jnp.float32)
    targets2 = jax.random.randint(k4, (batch2,), 0, NUM_CLASSES, dtype=jnp.int32)
    out2 = jax.block_until_ready(focal_loss(logits2, targets2, alpha))
    ref2 = focal_loss_ref(logits2, targets2, alpha)
    assert jnp.allclose(out2, ref2, rtol=1e-4, atol=1e-6), (out2, ref2)

    print("KERNEL_OK")
</pallas_src>

<mosaic_0001>
module attributes {stable_mosaic.version = 11 : i64} {
  func.func @focal_loss_kernel(%arg0: i32, %arg1: memref<16x128xf32, #tpu.memory_space<vmem>>, %arg2: memref<1x128xi32, #tpu.memory_space<vmem>>, %arg3: memref<16x1xf32, #tpu.memory_space<vmem>>, %arg4: memref<1x128xf32, #tpu.memory_space<vmem>>) attributes {dimension_semantics = [#tpu.dimension_semantics<parallel>], iteration_bounds = array<i64: 1>, scalar_prefetch = 0 : i64, scratch_operands = 0 : i64, tpu.core_type = #tpu.core_type<tc>, window_params = [{transform_indices = @transform_0, window_bounds = array<i64: 16, 128>}, {transform_indices = @transform_1, window_bounds = array<i64: 1, 128>}, {pipeline_mode = #tpu.pipeline_mode<synchronous>, transform_indices = @transform_2, window_bounds = array<i64: 16, 1>}, {transform_indices = @transform_3, window_bounds = array<i64: 1, 128>}]} {
    %c0 = arith.constant 0 : index
    %c0_0 = arith.constant 0 : index
    %0 = vector.load %arg1[%c0, %c0_0] : memref<16x128xf32, #tpu.memory_space<vmem>>, vector<16x128xf32>
    %c0_1 = arith.constant 0 : index
    %c0_2 = arith.constant 0 : index
    %1 = vector.load %arg2[%c0_1, %c0_2] : memref<1x128xi32, #tpu.memory_space<vmem>>, vector<1x128xi32>
    %c0_3 = arith.constant 0 : index
    %c0_4 = arith.constant 0 : index
    %2 = vector.load %arg3[%c0_3, %c0_4] : memref<16x1xf32, #tpu.memory_space<vmem>>, vector<16x1xf32>
    %cst = arith.constant dense<0xFF800000> : vector<128xf32>
    %3 = vector.multi_reduction <maximumf>, %0, %cst [0] : vector<16x128xf32> to vector<128xf32>
    %4 = vector.shape_cast %3 : vector<128xf32> to vector<1x128xf32>
    %5 = vector.broadcast %4 : vector<1x128xf32> to vector<16x128xf32>
    %6 = arith.subf %0, %5 : vector<16x128xf32>
    %7 = math.exp %6 : vector<16x128xf32>
    %cst_5 = arith.constant dense<0.000000e+00> : vector<128xf32>
    %8 = vector.multi_reduction <add>, %7, %cst_5 [0] : vector<16x128xf32> to vector<128xf32>
    %9 = vector.shape_cast %8 : vector<128xf32> to vector<1x128xf32>
    %10 = math.log %9 : vector<1x128xf32>
    %11 = tpu.iota {dimensions = array<i32: 0>} : vector<16x128xi32>
    %12 = vector.broadcast %1 : vector<1x128xi32> to vector<16x128xi32>
    %13 = arith.cmpi eq, %11, %12 : vector<16x128xi32>
    %14 = arith.extui %13 : vector<16x128xi1> to vector<16x128xi32>
    %15 = arith.sitofp %14 : vector<16x128xi32> to vector<16x128xf32>
    %16 = arith.mulf %15, %6 : vector<16x128xf32>
    %cst_6 = arith.constant dense<0.000000e+00> : vector<128xf32>
    %17 = vector.multi_reduction <add>, %16, %cst_6 [0] : vector<16x128xf32> to vector<128xf32>
    %18 = vector.shape_cast %17 : vector<128xf32> to vector<1x128xf32>
    %19 = arith.subf %10, %18 : vector<1x128xf32>
    %cst_7 = arith.constant 0.000000e+00 : f32
    %20 = vector.broadcast %cst_7 : f32 to vector<1x128xf32>
    %21 = arith.subf %20, %19 : vector<1x128xf32>
    %22 = math.exp %21 : vector<1x128xf32>
    %23 = vector.broadcast %2 : vector<16x1xf32> to vector<16x128xf32>
    %24 = arith.mulf %15, %23 : vector<16x128xf32>
    %cst_8 = arith.constant dense<0.000000e+00> : vector<128xf32>
    %25 = vector.multi_reduction <add>, %24, %cst_8 [0] : vector<16x128xf32> to vector<128xf32>
    %26 = vector.shape_cast %25 : vector<128xf32> to vector<1x128xf32>
    %cst_9 = arith.constant 1.000000e+00 : f32
    %27 = vector.broadcast %cst_9 : f32 to vector<1x128xf32>
    %28 = arith.subf %27, %22 : vector<1x128xf32>
    %29 = arith.mulf %28, %28 : vector<1x128xf32>
    %30 = arith.mulf %26, %29 : vector<1x128xf32>
    %31 = arith.mulf %30, %19 : vector<1x128xf32>
    %c0_10 = arith.constant 0 : index
    %c0_11 = arith.constant 0 : index
    %32 = vector.load %arg4[%c0_10, %c0_11] : memref<1x128xf32, #tpu.memory_space<vmem>>, vector<1x128xf32>
    tpu.vector_store %arg4[%c0_10, %c0_11], %31 {strides = array<i32>} : memref<1x128xf32, #tpu.memory_space<vmem>>, vector<1x128xf32>,
    return
  }
  func.func @transform_0(%arg0: i32) -> (i32, i32) {
    %c0_i32 = arith.constant 0 : i32
    %c0_i32_0 = arith.constant 0 : i32
    return %c0_i32, %arg0 : i32, i32
  }
  func.func @transform_1(%arg0: i32) -> (i32, i32) {
    %c0_i32 = arith.constant 0 : i32
    %c0_i32_0 = arith.constant 0 : i32
    return %c0_i32, %arg0 : i32, i32
  }
  func.func @transform_2(%arg0: i32) -> (i32, i32) {
    %c0_i32 = arith.constant 0 : i32
    %c0_i32_0 = arith.constant 0 : i32
    %c0_i32_1 = arith.constant 0 : i32
    return %c0_i32, %c0_i32_0 : i32, i32
  }
  func.func @transform_3(%arg0: i32) -> (i32, i32) {
    %c0_i32 = arith.constant 0 : i32
    %c0_i32_0 = arith.constant 0 : i32
    return %c0_i32, %arg0 : i32, i32
  }
}

</mosaic_0001>

<llo_original>
// kernel: tpu_custom_call.1
$region0: #{tpu_custom_call.1}
  #allocation0 [shape = 'u32[]', space=smem, size = 0x4, offset = 0x4, fixed_abs, tag = 'smem constant byte address 0x4 - core index']
  #allocation1 [shape = 'u32[144,128]{1,0:T(1,128)}', space=vmem, size = 0x12000, scoped, tag = 'internal scratch']
  %s0 = inlined_call_operand.vmem [shape: f32[16,128], index: 0, kind: input, shape index: {}]
  %s1 = inlined_call_operand.vmem [shape: s32[1,128], index: 1, kind: input, shape index: {}]
  %s2 = inlined_call_operand.vmem [shape: f32[16,1], index: 2, kind: input, shape index: {}]
  %s3 = inlined_call_operand.hbm [shape: f32[1,128], index: 3, kind: output, shape index: {}]
  %s4 = sld [smem:[#allocation0]]
  $region22: #{tpu_custom_call.1} parent=0
    _
  %s6 = ssub.s32 1, %s4
  %s7 = scalar_select 0, %s6, %s4
  $region1: #{tpu_custom_call.1} parent=0
    #allocation2 [shape = 'u8[512]{0}', space=vmem, size = 0x400, scoped, tag = 'output window, operand 0, single buffered']
    #allocation3 [shape = 's32[1]{0}', space=sflag, size = 0x4, scoped, tag = 'scoped memory for tpu_custom_call.1']
    %8 = vsyncpa [#allocation3], 0
    // Predicated region
    $region2: #{tpu_custom_call.1} parent=1 // pred_check
      _
    $region3: #{tpu_custom_call.1} parent=1 // pred_check_branch
      %10 = sbr.rel (0) target = $region5
    $region4: #{tpu_custom_call.1} parent=1 // pred_region
      _
    $region5: #{tpu_custom_call.1} parent=1 // pred_fallthru
      _
    // Predicated region
    $region6: #{tpu_custom_call.1} parent=1 // pred_check
      _
    $region7: #{tpu_custom_call.1} parent=1 // pred_check_branch
      %12 = sbr.rel (0) target = $region9
    $region8: #{tpu_custom_call.1} parent=1 // pred_region
      _
    $region9: #{tpu_custom_call.1} parent=1 // pred_fallthru
      _
    // Predicated region
    $region10: #{tpu_custom_call.1} parent=1 // pred_check
      _
    $region11: #{tpu_custom_call.1} parent=1 // pred_check_branch
      %14 = sbr.rel (0) target = $region13
    $region12: #{tpu_custom_call.1} parent=1 // pred_region
      _
    $region13: #{tpu_custom_call.1} parent=1 // pred_fallthru
      _
    %v15 = vld [vmem:[%s0] sm:$0xff]
    %v16 = vld [vmem:[%s0 + $0x8] sm:$0xff]
    %v17 = vld [vmem:[%s1] sm:$0x1]
    %v18 = vld [vmem:[%s2] sm:$0xff]
    %v19 = vld [vmem:[%s2 + $0x8] sm:$0xff]
    %v20 = vmax.f32 %v15, %v16
    %v21 = vrot.slane %v20, 4
    %v22 = vmax.f32 %v20, %v21
    %v23 = vrot.slane %v22, 2
    %v24 = vmax.f32 %v22, %v23
    %v25 = vrot.slane %v24, 1
    %v26 = vmax.f32 %v24, %v25
    %v27 = vsub.f32 %v15, %v26
    %v28 = vsub.f32 %v16, %v26
    %v29 = vmul.f32 %v27, 1.442695
    %v30 = vpow.pop %v29
    %v31 = vmul.f32 %v28, 1.442695
    %v32 = vpow.pop %v31
    %v33 = vadd.f32 %v30, %v32
    %v34 = vrot.slane %v33, 4
    %v35 = vadd.f32 %v33, %v34
    %v36 = vrot.slane %v35, 2
    %v37 = vadd.f32 %v35, %v36
    %v38 = vrot.slane %v37, 1
    %v39 = vadd.f32 %v37, %v38
    %v40 = vlog2.pop %v39
    %v41 = vmul.f32 %v40, 0.6931472
    %v42 = vlaneseq
    %v43 = vshrl.u32 %v42, 7
    %v44 = vadd.s32 %v43, 8
    %v45 = vlaneseq
    %v46 = vshrl.u32 %v45, 7
    %v47 = vsub.s32 0, %v46
    %v48 = vrot.slane %v17, %v47
    %vm49 = vcmp.eq.s32.totalorder %v43, %v48
    %vm50 = vcmp.eq.s32.totalorder %v44, %v48
    %v51 = vsel %vm49, 1, 0
    %v52 = vsel %vm50, 1, 0
    %v53 = vcvt.s32.f32 %v51
    %v54 = vcvt.s32.f32 %v52
    %v55 = vmul.f32 %v53, %v27
    %v56 = vmul.f32 %v54, %v28
    %v57 = vadd.f32 %v55, %v56
    %v58 = vrot.slane %v57, 4
    %v59 = vadd.f32 %v57, %v58
    %v60 = vrot.slane %v59, 2
    %v61 = vadd.f32 %v59, %v60
    %v62 = vrot.slane %v61, 1
    %v63 = vadd.f32 %v61, %v62
    %v64 = vsub.f32 %v41, %v63
    %v65 = vsub.f32 0.0, %v64
    %v66 = vmul.f32 %v65, 1.442695
    %v67 = vpow.pop %v66
    %69 = vset.pattern.permute.xlu0 0
    %70 = vperm.xlu0 %69, %v18
    %v71 = vpop.permute.xlu0 %70
    %74 = vset.pattern.permute.xlu0 0
    %75 = vperm.xlu0 %74, %v19
    %v76 = vpop.permute.xlu0 %75
    %v78 = vmul.f32 %v53, %v71
    %v79 = vmul.f32 %v54, %v76
    %v80 = vadd.f32 %v78, %v79
    %v81 = vrot.slane %v80, 4
    %v82 = vadd.f32 %v80, %v81
    %v83 = vrot.slane %v82, 2
    %v84 = vadd.f32 %v82, %v83
    %v85 = vrot.slane %v84, 1
    %v86 = vadd.f32 %v84, %v85
    %v87 = vsub.f32 1.0, %v67
    %v88 = vmul.f32 %v87, %v87
    %v89 = vmul.f32 %v86, %v88
    %v90 = vmul.f32 %v89, %v64
    %91 = vst [vmem:[#allocation2] sm:$0x1] %v90
    // Predicated region
    $region14: #{tpu_custom_call.1} parent=1 // pred_check
      _
    $region15: #{tpu_custom_call.1} parent=1 // pred_check_branch
      %93 = sbr.rel (0) target = $region17
    $region16: #{tpu_custom_call.1} parent=1 // pred_region
      %s95 = ssub.s32 16, 16
      %96 = vsyncadd [#allocation3], %s95
      %s98 = sshll.u32 [#allocation2], 4
      %s99 = int_to_ptr.vmem [resolvable:$true] %s98
      %101 = dma.vmem_to_hbm [thread:$0]  %s99, 16, %s3, [#allocation3]
    $region17: #{tpu_custom_call.1} parent=1 // pred_fallthru
      _
    // Predicated region
    $region18: #{tpu_custom_call.1} parent=1 // pred_check
      _
    $region19: #{tpu_custom_call.1} parent=1 // pred_check_branch
      %103 = sbr.rel (0) target = $region21
    $region20: #{tpu_custom_call.1} parent=1 // pred_region
      %104 = dma.done [#allocation3], 16
    $region21: #{tpu_custom_call.1} parent=1 // pred_fallthru
      _
    %105 = vsyncpa [#allocation3], 1

</llo_original>
